<compile_context>
chip_gen: v6e
topology: v6e:2x2x1
jax: 0.10.0
libtpu: 0.0.40
codegen_flags: <defaults>
</compile_context>

<pallas_src>
import jax
import jax.numpy as jnp
from jax.experimental import pallas as pl
from jax.experimental.pallas import tpu as pltpu

EPS = 1e-5


# ----------------------------------------------------------------- kernel ----
def _cbam_kernel(bsp_ref, x_ref, w1_ref, w2_ref, band_ref, g_ref, b_ref, o_ref):
    # bsp_ref:  (1,) SMEM           spatial-attention conv bias
    # x_ref:    (B, C, HW)          input, NCHW with spatial dims flattened (lane-dense)
    # w1_ref:   (C, Cr)             SE reduce weight (1x1 conv as matmul)
    # w2_ref:   (Cr, C)             SE expand weight
    # band_ref: (2*HW, HW)          7x7 conv (padding=3) as a single im2col band matrix
    # g_ref/b_ref: (C, 1)           BatchNorm gamma / beta
    # o_ref:    (B, C, HW)          output
    B, C, HW = x_ref.shape
    x = x_ref[...]

    # ---------- channel attention: ca = sigmoid(SE(maxpool) + SE(avgpool)) ----
    maxp = jnp.max(x, axis=-1)                       # (B, C)  AdaptiveMaxPool2d(1)
    avgp = jnp.sum(x, axis=-1) * (1.0 / HW)          # (B, C)  AdaptiveAvgPool2d(1)
    h = (jnp.maximum(jnp.dot(maxp, w1_ref[...],
                             preferred_element_type=jnp.float32), 0.0)
         + jnp.maximum(jnp.dot(avgp, w1_ref[...],
                               preferred_element_type=jnp.float32), 0.0))
    # w2 is linear, so SE(max)+SE(avg) == (relu(max@w1)+relu(avg@w1)) @ w2
    ca = jax.nn.sigmoid(jnp.dot(h, w2_ref[...],
                                preferred_element_type=jnp.float32))   # (B, C)
    x_ca = x * ca[:, :, None]                        # out = x * ca(x)

    # ---------- spatial attention: 7x7 conv over [max_c, mean_c] --------------
    mx = jnp.max(x_ca, axis=1)                       # (B, HW)  torch.max(dim=1)
    mn = jnp.sum(x_ca, axis=1) * (1.0 / C)           # (B, HW)  torch.mean(dim=1)
    stacked = jnp.concatenate([mx, mn], axis=-1)     # (B, 2*HW), 128-aligned concat
    logit = jnp.dot(stacked, band_ref[...],          # ONE MXU matmul, K = 2*HW
                    preferred_element_type=jnp.float32) + bsp_ref[0]
    sa = jax.nn.sigmoid(logit)                       # (B, HW)

    # ---------- out*sa, residual, BatchNorm2d (training statistics) -----------
    y = x + x_ca * sa[:, None, :]                    # (B, C, HW)
    n = B * HW
    s1 = jnp.sum(y, axis=0)                                          # (C, HW)
    mean = jnp.sum(s1, axis=-1, keepdims=True) * (1.0 / n)           # (C, 1)
    d = y - mean[None, :, :]
    s2 = jnp.sum(d * d, axis=0)                                      # (C, HW)
    var = jnp.sum(s2, axis=-1, keepdims=True) * (1.0 / n)            # biased (train)
    scale = g_ref[...] * jax.lax.rsqrt(var + EPS)                    # (C, 1)
    shift = b_ref[...] - mean * scale                                # (C, 1)
    # TODO(synk): running_mean/running_var updates are a training-time side effect
    #             that does not change the forward output; not emitted.
    o_ref[...] = y * scale[None, :, :] + shift[None, :, :]


# --------------------------------------------------------------- wrapper -----
def _im2col_band(w_sp, H, W):
    # w_sp: (7, 7, 2) = (dy, dx, cin); cin 0 = channel-max map, 1 = channel-mean
    # map (matches torch.cat([max, avg], dim=1) order).
    # Returns band (2*H*W, H*W) with
    #   band[cin*H*W + py*W + px, y*W + x] = w_sp[py - y + 3, px - x + 3, cin]
    # (zero outside the 7-tap window), so the whole padded 7x7 conv becomes
    #   logit = concat([max_map, mean_map], -1) @ band
    # with BOTH H- and W-direction zero padding folded into the band matrix.
    dyi = jnp.arange(H)[:, None] - jnp.arange(H)[None, :] + 3        # (H, H) [py, y]
    dxi = jnp.arange(W)[:, None] - jnp.arange(W)[None, :] + 3        # (W, W) [px, x]
    vy = (dyi >= 0) & (dyi < 7)
    vx = (dxi >= 0) & (dxi < 7)
    w_g = w_sp[jnp.clip(dyi, 0, 6)[:, None, :, None],
               jnp.clip(dxi, 0, 6)[None, :, None, :], :]             # (H, W, H, W, 2)
    mask = (vy[:, None, :, None] & vx[None, :, None, :])[..., None]
    band = jnp.where(mask, w_g, 0.0)                                 # (H, W, H, W, 2)
    return jnp.transpose(band, (4, 0, 1, 2, 3)).reshape(2 * H * W, H * W)


def cbam_forward(x_nchw, params):
    B, C, H, W = x_nchw.shape
    HW = H * W
    x = x_nchw.reshape(B, C, HW).astype(jnp.float32)   # metadata-only reshape
    Cr = params["se_w1"].shape[1]
    band = _im2col_band(params["sp_w"], H, W)           # (2*HW, HW)

    out = pl.pallas_call(
        _cbam_kernel,
        out_shape=jax.ShapeDtypeStruct((B, C, HW), jnp.float32),
        grid=(1,),
        in_specs=[
            pl.BlockSpec(memory_space=pltpu.MemorySpace.SMEM),   # sp bias (1,)
            pl.BlockSpec((B, C, HW), lambda i: (0, 0, 0)),       # x
            pl.BlockSpec((C, Cr), lambda i: (0, 0)),             # se_w1
            pl.BlockSpec((Cr, C), lambda i: (0, 0)),             # se_w2
            pl.BlockSpec((2 * HW, HW), lambda i: (0, 0)),        # im2col band
            pl.BlockSpec((C, 1), lambda i: (0, 0)),              # bn gamma
            pl.BlockSpec((C, 1), lambda i: (0, 0)),              # bn beta
        ],
        out_specs=pl.BlockSpec((B, C, HW), lambda i: (0, 0, 0)),
        compiler_params=pltpu.CompilerParams(
            dimension_semantics=("arbitrary",)),
    )(params["sp_b"], x, params["se_w1"], params["se_w2"], band,
      params["bn_g"], params["bn_b"])

    return out.reshape(B, C, H, W)                       # metadata-only reshape


# ------------------------------------------------- pure-JAX reference --------
def _reference(x_nchw, params):
    hp = jax.lax.Precision.HIGHEST
    x = jnp.transpose(x_nchw, (0, 2, 3, 1)).astype(jnp.float32)   # NHWC
    B, H, W, C = x.shape
    xr = x.reshape(B, H * W, C)
    maxp, avgp = jnp.max(xr, axis=1), jnp.mean(xr, axis=1)

    def se(v):
        h = jnp.maximum(jnp.dot(v, params["se_w1"], precision=hp), 0.0)
        return jnp.dot(h, params["se_w2"], precision=hp)

    ca = jax.nn.sigmoid(se(maxp) + se(avgp))
    out = x * ca[:, None, None, :]
    mx, mn = jnp.max(out, axis=-1), jnp.mean(out, axis=-1)
    pm = jnp.pad(mx, ((0, 0), (3, 3), (3, 3)))
    pn = jnp.pad(mn, ((0, 0), (3, 3), (3, 3)))
    w = params["sp_w"]
    logit = jnp.zeros((B, H, W), jnp.float32) + params["sp_b"][0]
    for dy in range(7):
        for dx in range(7):
            logit = logit + pm[:, dy:dy + H, dx:dx + W] * w[dy, dx, 0]
            logit = logit + pn[:, dy:dy + H, dx:dx + W] * w[dy, dx, 1]
    y = x + out * jax.nn.sigmoid(logit)[..., None]
    yf = y.reshape(B * H * W, C)
    mean = jnp.mean(yf, axis=0, keepdims=True)
    var = jnp.mean((yf - mean) ** 2, axis=0, keepdims=True)
    g = params["bn_g"].reshape(1, C)
    b = params["bn_b"].reshape(1, C)
    yn = (yf - mean) * jax.lax.rsqrt(var + EPS) * g + b
    return jnp.transpose(yn.reshape(B, H, W, C), (0, 3, 1, 2))


if __name__ == "__main__":
    B, C, H, W = 2, 32, 16, 16
    reduction = 16
    Cr = C // reduction

    key = jax.random.PRNGKey(0)
    ks = jax.random.split(key, 5)
    params = {
        # ChannelAttention SE 1x1 convs (no bias) stored as (in, out) matmul weights
        "se_w1": 0.1 * jax.random.normal(ks[0], (C, Cr), jnp.float32),
        "se_w2": 0.1 * jax.random.normal(ks[1], (Cr, C), jnp.float32),
        # SpatialAttention 7x7 conv weight in HWI layout (dy, dx, cin);
        # cin 0 = channel-max map, cin 1 = channel-mean map; plus bias.
        "sp_w": 0.1 * jax.random.normal(ks[2], (7, 7, 2), jnp.float32),
        "sp_b": 0.05 * jax.random.normal(ks[3], (1,), jnp.float32),
        # BatchNorm2d affine params (default init: weight=1, bias=0)
        "bn_g": jnp.ones((C, 1), jnp.float32),
        "bn_b": jnp.zeros((C, 1), jnp.float32),
    }

    x = jax.random.normal(ks[4], (B, C, H, W), jnp.float32)
    out = jax.jit(cbam_forward)(x, params)
    out = jax.block_until_ready(out)

    assert out.shape == (B, C, H, W), out.shape
    assert bool(jnp.all(jnp.isfinite(out)))
    ref = _reference(x, params)
    assert bool(jnp.allclose(out, ref, atol=5e-3, rtol=5e-3)), float(
        jnp.max(jnp.abs(out - ref)))
    print("KERNEL_OK")
</pallas_src>

<mosaic_0001>
module attributes {stable_mosaic.version = 11 : i64} {
  func.func @_cbam_kernel(%arg0: i32, %arg1: memref<1xf32, #tpu.memory_space<smem>>, %arg2: memref<2x32x256xf32, #tpu.memory_space<vmem>>, %arg3: memref<32x2xf32, #tpu.memory_space<vmem>>, %arg4: memref<2x32xf32, #tpu.memory_space<vmem>>, %arg5: memref<512x256xf32, #tpu.memory_space<vmem>>, %arg6: memref<32x1xf32, #tpu.memory_space<vmem>>, %arg7: memref<32x1xf32, #tpu.memory_space<vmem>>, %arg8: memref<2x32x256xf32, #tpu.memory_space<vmem>>) attributes {dimension_semantics = [#tpu.dimension_semantics<arbitrary>], iteration_bounds = array<i64: 1>, scalar_prefetch = 0 : i64, scratch_operands = 0 : i64, tpu.core_type = #tpu.core_type<tc>, window_params = [{transform_indices = @transform_0, window_bounds = array<i64: 1>}, {pipeline_mode = #tpu.pipeline_mode<synchronous>, transform_indices = @transform_1, window_bounds = array<i64: 2, 32, 256>}, {pipeline_mode = #tpu.pipeline_mode<synchronous>, transform_indices = @transform_2, window_bounds = array<i64: 32, 2>}, {pipeline_mode = #tpu.pipeline_mode<synchronous>, transform_indices = @transform_3, window_bounds = array<i64: 2, 32>}, {pipeline_mode = #tpu.pipeline_mode<synchronous>, transform_indices = @transform_4, window_bounds = array<i64: 512, 256>}, {pipeline_mode = #tpu.pipeline_mode<synchronous>, transform_indices = @transform_5, window_bounds = array<i64: 32, 1>}, {pipeline_mode = #tpu.pipeline_mode<synchronous>, transform_indices = @transform_6, window_bounds = array<i64: 32, 1>}, {pipeline_mode = #tpu.pipeline_mode<synchronous>, transform_indices = @transform_7, window_bounds = array<i64: 2, 32, 256>}]} {
    %c0 = arith.constant 0 : index
    %c0_0 = arith.constant 0 : index
    %c0_1 = arith.constant 0 : index
    %0 = vector.load %arg2[%c0, %c0_0, %c0_1] : memref<2x32x256xf32, #tpu.memory_space<vmem>>, vector<2x32x256xf32>
    %cst = arith.constant dense<0xFF800000> : vector<2x32xf32>
    %1 = vector.multi_reduction <maximumf>, %0, %cst [2] : vector<2x32x256xf32> to vector<2x32xf32>
    %cst_2 = arith.constant dense<0.000000e+00> : vector<2x32xf32>
    %2 = vector.multi_reduction <add>, %0, %cst_2 [2] : vector<2x32x256xf32> to vector<2x32xf32>
    %cst_3 = arith.constant 3.906250e-03 : f32
    %3 = vector.broadcast %cst_3 : f32 to vector<2x32xf32>
    %4 = arith.mulf %2, %3 : vector<2x32xf32>
    %c0_4 = arith.constant 0 : index
    %c0_5 = arith.constant 0 : index
    %5 = vector.load %arg3[%c0_4, %c0_5] : memref<32x2xf32, #tpu.memory_space<vmem>>, vector<32x2xf32>
    %cst_6 = arith.constant dense<0.000000e+00> : vector<2x2xf32>
    %6 = tpu.matmul %1, %5, %cst_6 {dimension_numbers = #tpu.dot_dimension_numbers<[1], [0], [0], [1], [0, 0, 1, 1], [], []>} : vector<2x32xf32>, vector<32x2xf32>, vector<2x2xf32> -> vector<2x2xf32>
    %cst_7 = arith.constant 0.000000e+00 : f32
    %7 = vector.broadcast %cst_7 : f32 to vector<2x2xf32>
    %8 = arith.maximumf %6, %7 : vector<2x2xf32>
    %c0_8 = arith.constant 0 : index
    %c0_9 = arith.constant 0 : index
    %9 = vector.load %arg3[%c0_8, %c0_9] : memref<32x2xf32, #tpu.memory_space<vmem>>, vector<32x2xf32>
    %cst_10 = arith.constant dense<0.000000e+00> : vector<2x2xf32>
    %10 = tpu.matmul %4, %9, %cst_10 {dimension_numbers = #tpu.dot_dimension_numbers<[1], [0], [0], [1], [0, 0, 1, 1], [], []>} : vector<2x32xf32>, vector<32x2xf32>, vector<2x2xf32> -> vector<2x2xf32>
    %cst_11 = arith.constant 0.000000e+00 : f32
    %11 = vector.broadcast %cst_11 : f32 to vector<2x2xf32>
    %12 = arith.maximumf %10, %11 : vector<2x2xf32>
    %13 = arith.addf %8, %12 : vector<2x2xf32>
    %c0_12 = arith.constant 0 : index
    %c0_13 = arith.constant 0 : index
    %14 = vector.load %arg4[%c0_12, %c0_13] : memref<2x32xf32, #tpu.memory_space<vmem>>, vector<2x32xf32>
    %cst_14 = arith.constant dense<0.000000e+00> : vector<2x32xf32>
    %15 = tpu.matmul %13, %14, %cst_14 {dimension_numbers = #tpu.dot_dimension_numbers<[1], [0], [0], [1], [0, 0, 1, 1], [], []>} : vector<2x2xf32>, vector<2x32xf32>, vector<2x32xf32> -> vector<2x32xf32>
    %16 = arith.negf %15 : vector<2x32xf32>
    %17 = math.exp %16 : vector<2x32xf32>
    %cst_15 = arith.constant 1.000000e+00 : f32
    %18 = vector.broadcast %cst_15 : f32 to vector<2x32xf32>
    %19 = arith.addf %18, %17 : vector<2x32xf32>
    %20 = arith.divf %18, %19 : vector<2x32xf32>
    %21 = vector.shape_cast %20 : vector<2x32xf32> to vector<2x32x1xf32>
    %22 = vector.broadcast %21 : vector<2x32x1xf32> to vector<2x32x256xf32>
    %23 = arith.mulf %0, %22 : vector<2x32x256xf32>
    %cst_16 = arith.constant dense<0xFF800000> : vector<2x256xf32>
    %24 = vector.multi_reduction <maximumf>, %23, %cst_16 [1] : vector<2x32x256xf32> to vector<2x256xf32>
    %cst_17 = arith.constant dense<0.000000e+00> : vector<2x256xf32>
    %25 = vector.multi_reduction <add>, %23, %cst_17 [1] : vector<2x32x256xf32> to vector<2x256xf32>
    %cst_18 = arith.constant 3.125000e-02 : f32
    %26 = vector.broadcast %cst_18 : f32 to vector<2x256xf32>
    %27 = arith.mulf %25, %26 : vector<2x256xf32>
    %28 = tpu.concatenate %24, %27 in 1 : vector<2x256xf32>, vector<2x256xf32> -> vector<2x512xf32>
    %c0_19 = arith.constant 0 : index
    %c0_20 = arith.constant 0 : index
    %29 = vector.load %arg5[%c0_19, %c0_20] : memref<512x256xf32, #tpu.memory_space<vmem>>, vector<512x256xf32>
    %cst_21 = arith.constant dense<0.000000e+00> : vector<2x256xf32>
    %30 = tpu.matmul %28, %29, %cst_21 {dimension_numbers = #tpu.dot_dimension_numbers<[1], [0], [0], [1], [0, 0, 1, 1], [], []>} : vector<2x512xf32>, vector<512x256xf32>, vector<2x256xf32> -> vector<2x256xf32>
    %c0_22 = arith.constant 0 : index
    %31 = memref.load %arg1[%c0_22] : memref<1xf32, #tpu.memory_space<smem>>
    %32 = vector.broadcast %31 : f32 to vector<2x256xf32>
    %33 = arith.addf %30, %32 : vector<2x256xf32>
    %34 = arith.negf %33 : vector<2x256xf32>
    %35 = math.exp %34 : vector<2x256xf32>
    %cst_23 = arith.constant 1.000000e+00 : f32
    %36 = vector.broadcast %cst_23 : f32 to vector<2x256xf32>
    %37 = arith.addf %36, %35 : vector<2x256xf32>
    %38 = arith.divf %36, %37 : vector<2x256xf32>
    %39 = vector.shape_cast %38 : vector<2x256xf32> to vector<2x1x256xf32>
    %40 = vector.broadcast %39 : vector<2x1x256xf32> to vector<2x32x256xf32>
    %41 = arith.mulf %23, %40 : vector<2x32x256xf32>
    %42 = arith.addf %0, %41 : vector<2x32x256xf32>
    %cst_24 = arith.constant dense<0.000000e+00> : vector<32x256xf32>
    %43 = vector.multi_reduction <add>, %42, %cst_24 [0] : vector<2x32x256xf32> to vector<32x256xf32>
    %cst_25 = arith.constant dense<0.000000e+00> : vector<32xf32>
    %44 = vector.multi_reduction <add>, %43, %cst_25 [1] : vector<32x256xf32> to vector<32xf32>
    %45 = vector.shape_cast %44 : vector<32xf32> to vector<32x1xf32>
    %cst_26 = arith.constant 0.001953125 : f32
    %46 = vector.broadcast %cst_26 : f32 to vector<32x1xf32>
    %47 = arith.mulf %45, %46 : vector<32x1xf32>
    %48 = vector.shape_cast %47 : vector<32x1xf32> to vector<1x32x1xf32>
    %49 = vector.broadcast %48 : vector<1x32x1xf32> to vector<2x32x256xf32>
    %50 = arith.subf %42, %49 : vector<2x32x256xf32>
    %51 = arith.mulf %50, %50 : vector<2x32x256xf32>
    %cst_27 = arith.constant dense<0.000000e+00> : vector<32x256xf32>
    %52 = vector.multi_reduction <add>, %51, %cst_27 [0] : vector<2x32x256xf32> to vector<32x256xf32>
    %cst_28 = arith.constant dense<0.000000e+00> : vector<32xf32>
    %53 = vector.multi_reduction <add>, %52, %cst_28 [1] : vector<32x256xf32> to vector<32xf32>
    %54 = vector.shape_cast %53 : vector<32xf32> to vector<32x1xf32>
    %cst_29 = arith.constant 0.001953125 : f32
    %55 = vector.broadcast %cst_29 : f32 to vector<32x1xf32>
    %56 = arith.mulf %54, %55 : vector<32x1xf32>
    %c0_30 = arith.constant 0 : index
    %c0_31 = arith.constant 0 : index
    %57 = vector.load %arg6[%c0_30, %c0_31] : memref<32x1xf32, #tpu.memory_space<vmem>>, vector<32x1xf32>
    %cst_32 = arith.constant 9.99999974E-6 : f32
    %58 = vector.broadcast %cst_32 : f32 to vector<32x1xf32>
    %59 = arith.addf %56, %58 : vector<32x1xf32>
    %60 = math.rsqrt %59 : vector<32x1xf32>
    %61 = arith.mulf %57, %60 : vector<32x1xf32>
    %c0_33 = arith.constant 0 : index
    %c0_34 = arith.constant 0 : index
    %62 = vector.load %arg7[%c0_33, %c0_34] : memref<32x1xf32, #tpu.memory_space<vmem>>, vector<32x1xf32>
    %63 = arith.mulf %47, %61 : vector<32x1xf32>
    %64 = arith.subf %62, %63 : vector<32x1xf32>
    %65 = vector.shape_cast %61 : vector<32x1xf32> to vector<1x32x1xf32>
    %66 = vector.broadcast %65 : vector<1x32x1xf32> to vector<2x32x256xf32>
    %67 = arith.mulf %42, %66 : vector<2x32x256xf32>
    %68 = vector.shape_cast %64 : vector<32x1xf32> to vector<1x32x1xf32>
    %69 = vector.broadcast %68 : vector<1x32x1xf32> to vector<2x32x256xf32>
    %70 = arith.addf %67, %69 : vector<2x32x256xf32>
    %c0_35 = arith.constant 0 : index
    %c0_36 = arith.constant 0 : index
    %c0_37 = arith.constant 0 : index
    %71 = vector.load %arg8[%c0_35, %c0_36, %c0_37] : memref<2x32x256xf32, #tpu.memory_space<vmem>>, vector<2x32x256xf32>
    tpu.vector_store %arg8[%c0_35, %c0_36, %c0_37], %70 {strides = array<i32>} : memref<2x32x256xf32, #tpu.memory_space<vmem>>, vector<2x32x256xf32>,
    return
  }
  func.func @transform_0(%arg0: i32) -> i32 {
    %c0_i32 = arith.constant 0 : i32
    %c0_i32_0 = arith.constant 0 : i32
    return %c0_i32 : i32
  }
  func.func @transform_1(%arg0: i32) -> (i32, i32, i32) {
    %c0_i32 = arith.constant 0 : i32
    %c0_i32_0 = arith.constant 0 : i32
    %c0_i32_1 = arith.constant 0 : i32
    %c0_i32_2 = arith.constant 0 : i32
    return %c0_i32, %c0_i32_0, %c0_i32_1 : i32, i32, i32
  }
  func.func @transform_2(%arg0: i32) -> (i32, i32) {
    %c0_i32 = arith.constant 0 : i32
    %c0_i32_0 = arith.constant 0 : i32
    %c0_i32_1 = arith.constant 0 : i32
    return %c0_i32, %c0_i32_0 : i32, i32
  }
  func.func @transform_3(%arg0: i32) -> (i32, i32) {
    %c0_i32 = arith.constant 0 : i32
    %c0_i32_0 = arith.constant 0 : i32
    %c0_i32_1 = arith.constant 0 : i32
    return %c0_i32, %c0_i32_0 : i32, i32
  }
  func.func @transform_4(%arg0: i32) -> (i32, i32) {
    %c0_i32 = arith.constant 0 : i32
    %c0_i32_0 = arith.constant 0 : i32
    %c0_i32_1 = arith.constant 0 : i32
    return %c0_i32, %c0_i32_0 : i32, i32
  }
  func.func @transform_5(%arg0: i32) -> (i32, i32) {
    %c0_i32 = arith.constant 0 : i32
    %c0_i32_0 = arith.constant 0 : i32
    %c0_i32_1 = arith.constant 0 : i32
    return %c0_i32, %c0_i32_0 : i32, i32
  }
  func.func @transform_6(%arg0: i32) -> (i32, i32) {
    %c0_i32 = arith.constant 0 : i32
    %c0_i32_0 = arith.constant 0 : i32
    %c0_i32_1 = arith.constant 0 : i32
    return %c0_i32, %c0_i32_0 : i32, i32
  }
  func.func @transform_7(%arg0: i32) -> (i32, i32, i32) {
    %c0_i32 = arith.constant 0 : i32
    %c0_i32_0 = arith.constant 0 : i32
    %c0_i32_1 = arith.constant 0 : i32
    %c0_i32_2 = arith.constant 0 : i32
    return %c0_i32, %c0_i32_0, %c0_i32_1 : i32, i32, i32
  }
}

</mosaic_0001>

<llo_original>
// kernel: cbam_forward.1
$region0: #{cbam_forward.1}
  #allocation0 [shape = 'u32[]', space=smem, size = 0x4, offset = 0x4, fixed_abs, tag = 'smem constant byte address 0x4 - core index']
  #allocation1 [shape = 'u32[144,128]{1,0:T(1,128)}', space=vmem, size = 0x12000, scoped, tag = 'internal scratch']
  #allocation2 [shape = 'f32[1]{0:T(128)S(6)}', space=smem, size = 0x200, scoped, tag = 'scoped memory for cbam_forward.1']
  %s0 = inlined_call_operand.<no memory space> [shape: f32[1], index: 0, kind: input, shape index: {}]
  %s1 = inlined_call_operand.vmem [shape: f32[2,32,256], index: 1, kind: input, shape index: {}]
  %s2 = inlined_call_operand.vmem [shape: f32[32,2], index: 2, kind: input, shape index: {}]
  %s3 = inlined_call_operand.vmem [shape: f32[2,32], index: 3, kind: input, shape index: {}]
  %s4 = inlined_call_operand.vmem [shape: f32[512,256], index: 4, kind: input, shape index: {}]
  %s5 = inlined_call_operand.vmem [shape: f32[32,1], index: 5, kind: input, shape index: {}]
  %s6 = inlined_call_operand.vmem [shape: f32[32,1], index: 6, kind: input, shape index: {}]
  %s7 = inlined_call_operand.vmem [shape: f32[2,32,256], index: 7, kind: output, shape index: {}]
  %s8 = sld [smem:[#allocation0]]
  $region38: #{cbam_forward.1} parent=0
    _
  %s10 = ssub.s32 1, %s8
  %s11 = scalar_select 0, %s10, %s8
  %12 = sst [smem:[#allocation2]] %s0
  // Predicated region
  $region2: #{cbam_forward.1} parent=0 // pred_check
    _
  $region3: #{cbam_forward.1} parent=0 // pred_check_branch
    %14 = sbr.rel (0) target = $region5
  $region4: #{cbam_forward.1} parent=0 // pred_region
    _
  $region5: #{cbam_forward.1} parent=0 // pred_fallthru
    _
  // Predicated region
  $region6: #{cbam_forward.1} parent=0 // pred_check
    _
  $region7: #{cbam_forward.1} parent=0 // pred_check_branch
    %16 = sbr.rel (0) target = $region9
  $region8: #{cbam_forward.1} parent=0 // pred_region
    _
  $region9: #{cbam_forward.1} parent=0 // pred_fallthru
    _
  // Predicated region
  $region10: #{cbam_forward.1} parent=0 // pred_check
    _
  $region11: #{cbam_forward.1} parent=0 // pred_check_branch
    %18 = sbr.rel (0) target = $region13
  $region12: #{cbam_forward.1} parent=0 // pred_region
    _
  $region13: #{cbam_forward.1} parent=0 // pred_fallthru
    _
  // Predicated region
  $region14: #{cbam_forward.1} parent=0 // pred_check
    _
  $region15: #{cbam_forward.1} parent=0 // pred_check_branch
    %20 = sbr.rel (0) target = $region17
  $region16: #{cbam_forward.1} parent=0 // pred_region
    _
  $region17: #{cbam_forward.1} parent=0 // pred_fallthru
    _
  // Predicated region
  $region18: #{cbam_forward.1} parent=0 // pred_check
    _
  $region19: #{cbam_forward.1} parent=0 // pred_check_branch
    %22 = sbr.rel (0) target = $region21
  $region20: #{cbam_forward.1} parent=0 // pred_region
    _
  $region21: #{cbam_forward.1} parent=0 // pred_fallthru
    _
  // Predicated region
  $region22: #{cbam_forward.1} parent=0 // pred_check
    _
  $region23: #{cbam_forward.1} parent=0 // pred_check_branch
    %24 = sbr.rel (0) target = $region25
  $region24: #{cbam_forward.1} parent=0 // pred_region
    _
  $region25: #{cbam_forward.1} parent=0 // pred_fallthru
    _
  // Predicated region
  $region26: #{cbam_forward.1} parent=0 // pred_check
    _
  $region27: #{cbam_forward.1} parent=0 // pred_check_branch
    %26 = sbr.rel (0) target = $region29
  $region28: #{cbam_forward.1} parent=0 // pred_region
    _
  $region29: #{cbam_forward.1} parent=0 // pred_fallthru
    _
  %v27 = vld [vmem:[%s1] sm:$0xff]
  %v28 = vld [vmem:[%s1 + $0x8] sm:$0xff]
  %v29 = vld [vmem:[%s1 + $0x10] sm:$0xff]
  %v30 = vld [vmem:[%s1 + $0x18] sm:$0xff]
  %v31 = vld [vmem:[%s1 + $0x20] sm:$0xff]
  %v32 = vld [vmem:[%s1 + $0x28] sm:$0xff]
  %v33 = vld [vmem:[%s1 + $0x30] sm:$0xff]
  %v34 = vld [vmem:[%s1 + $0x38] sm:$0xff]
  %v35 = vld [vmem:[%s1 + $0x40] sm:$0xff]
  %v36 = vld [vmem:[%s1 + $0x48] sm:$0xff]
  %v37 = vld [vmem:[%s1 + $0x50] sm:$0xff]
  %v38 = vld [vmem:[%s1 + $0x58] sm:$0xff]
  %v39 = vld [vmem:[%s1 + $0x60] sm:$0xff]
  %v40 = vld [vmem:[%s1 + $0x68] sm:$0xff]
  %v41 = vld [vmem:[%s1 + $0x70] sm:$0xff]
  %v42 = vld [vmem:[%s1 + $0x78] sm:$0xff]
  %v43 = vmax.f32 %v27, %v28
  %44 = vmax.xlane.f32.xlu0 %v43
  %v45 = vpop.xlane.xlu0 %44
  %v46 = vmax.f32 %v29, %v30
  %47 = vmax.xlane.f32.xlu0 %v46
  %v48 = vpop.xlane.xlu0 %47
  %v49 = vmax.f32 %v31, %v32
  %50 = vmax.xlane.f32.xlu0 %v49
  %v51 = vpop.xlane.xlu0 %50
  %v52 = vmax.f32 %v33, %v34
  %53 = vmax.xlane.f32.xlu0 %v52
  %v54 = vpop.xlane.xlu0 %53
  %v55 = vmax.f32 %v35, %v36
  %56 = vmax.xlane.f32.xlu0 %v55
  %v57 = vpop.xlane.xlu0 %56
  %v58 = vmax.f32 %v37, %v38
  %59 = vmax.xlane.f32.xlu0 %v58
  %v60 = vpop.xlane.xlu0 %59
  %v61 = vmax.f32 %v39, %v40
  %62 = vmax.xlane.f32.xlu0 %v61
  %v63 = vpop.xlane.xlu0 %62
  %v64 = vmax.f32 %v41, %v42
  %65 = vmax.xlane.f32.xlu0 %v64
  %v66 = vpop.xlane.xlu0 %65
  %v67 = vadd.f32 %v27, %v28
  %68 = vadd.xlane.f32.xlu0 %v67
  %v69 = vpop.xlane.xlu0 %68
  %v70 = vadd.f32 %v29, %v30
  %71 = vadd.xlane.f32.xlu0 %v70
  %v72 = vpop.xlane.xlu0 %71
  %v73 = vadd.f32 %v31, %v32
  %74 = vadd.xlane.f32.xlu0 %v73
  %v75 = vpop.xlane.xlu0 %74
  %v76 = vadd.f32 %v33, %v34
  %77 = vadd.xlane.f32.xlu0 %v76
  %v78 = vpop.xlane.xlu0 %77
  %v79 = vadd.f32 %v35, %v36
  %80 = vadd.xlane.f32.xlu0 %v79
  %v81 = vpop.xlane.xlu0 %80
  %v82 = vadd.f32 %v37, %v38
  %83 = vadd.xlane.f32.xlu0 %v82
  %v84 = vpop.xlane.xlu0 %83
  %v85 = vadd.f32 %v39, %v40
  %86 = vadd.xlane.f32.xlu0 %v85
  %v87 = vpop.xlane.xlu0 %86
  %v88 = vadd.f32 %v41, %v42
  %89 = vadd.xlane.f32.xlu0 %v88
  %v90 = vpop.xlane.xlu0 %89
  %v91 = vmul.f32 %v69, 0.00390625
  %v92 = vmul.f32 %v72, 0.00390625
  %v93 = vmul.f32 %v75, 0.00390625
  %v94 = vmul.f32 %v78, 0.00390625
  %v95 = vmul.f32 %v81, 0.00390625
  %v96 = vmul.f32 %v84, 0.00390625
  %v97 = vmul.f32 %v87, 0.00390625
  %v98 = vmul.f32 %v90, 0.00390625
  %v99 = vld [vmem:[%s2] sm:$0xff]
  %v100 = vld [vmem:[%s2 + $0x8] sm:$0xff]
  %v101 = vld [vmem:[%s2 + $0x10] sm:$0xff]
  %v102 = vld [vmem:[%s2 + $0x18] sm:$0xff]
  %v111 = vlaneseq
  %v112 = vand.u32 %v111, 127
  %v113 = vlaneseq
  %v114 = vshrl.u32 %v113, 7
  %v115 = vsub.s32 %v112, %v114
  %v116 = vrot.slane %v45, %v115
  %v117 = vadd.s32 %v112, 4294967288
  %v118 = vlaneseq
  %v119 = vshrl.u32 %v118, 7
  %v120 = vsub.s32 %v117, %v119
  %v121 = vrot.slane %v48, %v120
  %vm122 = vcmask 130112
  %v123 = vsel %vm122, %v121, %v116
  %v124 = vadd.s32 %v112, 4294967280
  %v125 = vlaneseq
  %v126 = vshrl.u32 %v125, 7
  %v127 = vsub.s32 %v124, %v126
  %v128 = vrot.slane %v51, %v127
  %vm129 = vcmask 195712
  %v130 = vsel %vm129, %v128, %v123
  %v131 = vadd.s32 %v112, 4294967272
  %v132 = vlaneseq
  %v133 = vshrl.u32 %v132, 7
  %v134 = vsub.s32 %v131, %v133
  %v135 = vrot.slane %v54, %v134
  %vm136 = vcmask 261312
  %v137 = vsel %vm136, %v135, %v130
  %v138 = vlaneseq
  %v139 = vshrl.u32 %v138, 7
  %v140 = vsub.s32 %v112, %v139
  %v141 = vrot.slane %v57, %v140
  %v142 = vlaneseq
  %v143 = vshrl.u32 %v142, 7
  %v144 = vsub.s32 %v117, %v143
  %v145 = vrot.slane %v60, %v144
  %v146 = vsel %vm122, %v145, %v141
  %v147 = vlaneseq
  %v148 = vshrl.u32 %v147, 7
  %v149 = vsub.s32 %v124, %v148
  %v150 = vrot.slane %v63, %v149
  %v151 = vsel %vm129, %v150, %v146
  %v152 = vlaneseq
  %v153 = vshrl.u32 %v152, 7
  %v154 = vsub.s32 %v131, %v153
  %v155 = vrot.slane %v66, %v154
  %v156 = vsel %vm136, %v155, %v151
  %vm157 = vcmask 1041409
  %v158 = vsel %vm157, %v156, %v137
  %vm159 = vcmask 261120
  %v160 = vsel %vm159, %v158, 0
  %162 = vmatprep.subr.mxu0 0.0
  %163 = vmatpush1.msra.mxu0 0.0
  %164 = vmatprep.subr.mxu0 0.0
  %165 = vmatpush1.msra.mxu0 0.0
  %166 = vmatprep.subr.mxu0 0.0
  %167 = vmatpush1.msra.mxu0 0.0
  %168 = vmatprep.subr.mxu0 0.0
  %169 = vmatpush1.msra.mxu0 0.0
  %170 = vmatprep.subr.mxu0 0.0
  %171 = vmatpush1.msra.mxu0 0.0
  %172 = vmatprep.subr.mxu0 0.0
  %173 = vmatpush1.msra.mxu0 0.0
  %174 = vmatprep.subr.mxu0 0.0
  %175 = vmatpush1.msra.mxu0 0.0
  %176 = vmatprep.subr.mxu0 0.0
  %177 = vmatpush1.msra.mxu0 0.0
  %178 = vmatprep.subr.mxu0 0.0
  %179 = vmatpush1.msra.mxu0 0.0
  %180 = vmatprep.subr.mxu0 0.0
  %181 = vmatpush1.msra.mxu0 0.0
  %182 = vmatprep.subr.mxu0 0.0
  %183 = vmatpush1.msra.mxu0 0.0
  %184 = vmatprep.subr.mxu0 0.0
  %185 = vmatpush1.msra.mxu0 0.0
  %186 = vmatprep.subr.mxu0 0.0
  %187 = vmatpush1.msra.mxu0 %v102
  %188 = vmatprep.subr.mxu0 0.0
  %189 = vmatpush1.msra.mxu0 %v101
  %190 = vmatprep.subr.mxu0 0.0
  %191 = vmatpush1.msra.mxu0 %v100
  %192 = vmatprep.subr.mxu0 0.0
  %193 = vmatpush1.msra.mxu0 %v99
  %194 = vmatprep.subr.mxu0 0.0
  %195 = vmatpush2.msra.mxu0 0.0
  %196 = vmatprep.subr.mxu0 0.0
  %197 = vmatpush2.msra.mxu0 0.0
  %198 = vmatprep.subr.mxu0 0.0
  %199 = vmatpush2.msra.mxu0 0.0
  %200 = vmatprep.subr.mxu0 0.0
  %201 = vmatpush2.msra.mxu0 0.0
  %202 = vmatprep.subr.mxu0 0.0
  %203 = vmatpush2.msra.mxu0 0.0
  %204 = vmatprep.subr.mxu0 0.0
  %205 = vmatpush2.msra.mxu0 0.0
  %206 = vmatprep.subr.mxu0 0.0
  %207 = vmatpush2.msra.mxu0 0.0
  %208 = vmatprep.subr.mxu0 0.0
  %209 = vmatpush2.msra.mxu0 0.0
  %210 = vmatprep.subr.mxu0 0.0
  %211 = vmatpush2.msra.mxu0 0.0
  %212 = vmatprep.subr.mxu0 0.0
  %213 = vmatpush2.msra.mxu0 0.0
  %214 = vmatprep.subr.mxu0 0.0
  %215 = vmatpush2.msra.mxu0 0.0
  %216 = vmatprep.subr.mxu0 0.0
  %217 = vmatpush2.msra.mxu0 0.0
  %218 = vmatprep.subr.mxu0 0.0
  %219 = vmatpush2.msra.mxu0 0.0
  %220 = vmatprep.subr.mxu0 0.0
  %221 = vmatpush2.msra.mxu0 0.0
  %222 = vmatprep.subr.mxu0 0.0
  %223 = vmatpush2.msra.mxu0 0.0
  %224 = vmatprep.subr.mxu0 0.0
  %225 = vmatpush2.msra.mxu0 0.0
  %226 = vmatprep.mubr.f32.mxu0 0.0
  %227 = vmatmul.mubr.f32.gmra.mxu0 %v160
  %v228 = vpop.f32.mrf.mxu0
  %v229 = vadd.f32 0.0, %v228
  %v230 = vpop.f32.mrf.mxu0
  %231 = vdwg.mxu0
  %v232 = vmax.f32 %v229, 0.0
  %v241 = vlaneseq
  %v242 = vshrl.u32 %v241, 7
  %v243 = vsub.s32 %v112, %v242
  %v244 = vrot.slane %v91, %v243
  %v245 = vlaneseq
  %v246 = vshrl.u32 %v245, 7
  %v247 = vsub.s32 %v117, %v246
  %v248 = vrot.slane %v92, %v247
  %v249 = vsel %vm122, %v248, %v244
  %v250 = vlaneseq
  %v251 = vshrl.u32 %v250, 7
  %v252 = vsub.s32 %v124, %v251
  %v253 = vrot.slane %v93, %v252
  %v254 = vsel %vm129, %v253, %v249
  %v255 = vlaneseq
  %v256 = vshrl.u32 %v255, 7
  %v257 = vsub.s32 %v131, %v256
  %v258 = vrot.slane %v94, %v257
  %v259 = vsel %vm136, %v258, %v254
  %v260 = vlaneseq
  %v261 = vshrl.u32 %v260, 7
  %v262 = vsub.s32 %v112, %v261
  %v263 = vrot.slane %v95, %v262
  %v264 = vlaneseq
  %v265 = vshrl.u32 %v264, 7
  %v266 = vsub.s32 %v117, %v265
  %v267 = vrot.slane %v96, %v266
  %v268 = vsel %vm122, %v267, %v263
  %v269 = vlaneseq
  %v270 = vshrl.u32 %v269, 7
  %v271 = vsub.s32 %v124, %v270
  %v272 = vrot.slane %v97, %v271
  %v273 = vsel %vm129, %v272, %v268
  %v274 = vlaneseq
  %v275 = vshrl.u32 %v274, 7
  %v276 = vsub.s32 %v131, %v275
  %v277 = vrot.slane %v98, %v276
  %v278 = vsel %vm136, %v277, %v273
  %v279 = vsel %vm157, %v278, %v259
  %v280 = vsel %vm159, %v279, 0
  %282 = vmatprep.subr.mxu0 0.0
  %283 = vmatpush1.msra.mxu0 0.0
  %284 = vmatprep.subr.mxu0 0.0
  %285 = vmatpush1.msra.mxu0 0.0
  %286 = vmatprep.subr.mxu0 0.0
  %287 = vmatpush1.msra.mxu0 0.0
  %288 = vmatprep.subr.mxu0 0.0
  %289 = vmatpush1.msra.mxu0 0.0
  %290 = vmatprep.subr.mxu0 0.0
  %291 = vmatpush1.msra.mxu0 0.0
  %292 = vmatprep.subr.mxu0 0.0
  %293 = vmatpush1.msra.mxu0 0.0
  %294 = vmatprep.subr.mxu0 0.0
  %295 = vmatpush1.msra.mxu0 0.0
  %296 = vmatprep.subr.mxu0 0.0
  %297 = vmatpush1.msra.mxu0 0.0
  %298 = vmatprep.subr.mxu0 0.0
  %299 = vmatpush1.msra.mxu0 0.0
  %300 = vmatprep.subr.mxu0 0.0
  %301 = vmatpush1.msra.mxu0 0.0
  %302 = vmatprep.subr.mxu0 0.0
  %303 = vmatpush1.msra.mxu0 0.0
  %304 = vmatprep.subr.mxu0 0.0
  %305 = vmatpush1.msra.mxu0 0.0
  %306 = vmatprep.subr.mxu0 0.0
  %307 = vmatpush1.msra.mxu0 %v102
  %308 = vmatprep.subr.mxu0 0.0
  %309 = vmatpush1.msra.mxu0 %v101
  %310 = vmatprep.subr.mxu0 0.0
  %311 = vmatpush1.msra.mxu0 %v100
  %312 = vmatprep.subr.mxu0 0.0
  %313 = vmatpush1.msra.mxu0 %v99
  %314 = vmatprep.subr.mxu0 0.0
  %315 = vmatpush2.msra.mxu0 0.0
  %316 = vmatprep.subr.mxu0 0.0
  %317 = vmatpush2.msra.mxu0 0.0
  %318 = vmatprep.subr.mxu0 0.0
  %319 = vmatpush2.msra.mxu0 0.0
  %320 = vmatprep.subr.mxu0 0.0
  %321 = vmatpush2.msra.mxu0 0.0
  %322 = vmatprep.subr.mxu0 0.0
  %323 = vmatpush2.msra.mxu0 0.0
  %324 = vmatprep.subr.mxu0 0.0
  %325 = vmatpush2.msra.mxu0 0.0
  %326 = vmatprep.subr.mxu0 0.0
  %327 = vmatpush2.msra.mxu0 0.0
  %328 = vmatprep.subr.mxu0 0.0
  %329 = vmatpush2.msra.mxu0 0.0
  %330 = vmatprep.subr.mxu0 0.0
  %331 = vmatpush2.msra.mxu0 0.0
  %332 = vmatprep.subr.mxu0 0.0
  %333 = vmatpush2.msra.mxu0 0.0
  %334 = vmatprep.subr.mxu0 0.0
  %335 = vmatpush2.msra.mxu0 0.0
  %336 = vmatprep.subr.mxu0 0.0
  %337 = vmatpush2.msra.mxu0 0.0
  %338 = vmatprep.subr.mxu0 0.0
  %339 = vmatpush2.msra.mxu0 0.0
  %340 = vmatprep.subr.mxu0 0.0
  %341 = vmatpush2.msra.mxu0 0.0
  %342 = vmatprep.subr.mxu0 0.0
  %343 = vmatpush2.msra.mxu0 0.0
  %344 = vmatprep.subr.mxu0 0.0
  %345 = vmatpush2.msra.mxu0 0.0
  %346 = vmatprep.mubr.f32.mxu0 0.0
  %347 = vmatmul.mubr.f32.gmra.mxu0 %v280
  %v348 = vpop.f32.mrf.mxu0
  %v349 = vadd.f32 0.0, %v348
  %v350 = vpop.f32.mrf.mxu0
  %351 = vdwg.mxu0
  %v352 = vmax.f32 %v349, 0.0
  %v353 = vadd.f32 %v232, %v352
  %v354 = vld [vmem:[%s3] sm:$0x3]
  %vm355 = vcmask 15360
  %v357 = vsel %vm355, %v353, 0
  %vm359 = vcmask 1041408
  %v361 = vsel %vm359, %v354, 0
  %363 = vmatprep.subr.mxu0 0.0
  %364 = vmatpush1.msra.mxu0 0.0
  %365 = vmatprep.subr.mxu0 0.0
  %366 = vmatpush1.msra.mxu0 0.0
  %367 = vmatprep.subr.mxu0 0.0
  %368 = vmatpush1.msra.mxu0 0.0
  %369 = vmatprep.subr.mxu0 0.0
  %370 = vmatpush1.msra.mxu0 0.0
  %371 = vmatprep.subr.mxu0 0.0
  %372 = vmatpush1.msra.mxu0 0.0
  %373 = vmatprep.subr.mxu0 0.0
  %374 = vmatpush1.msra.mxu0 0.0
  %375 = vmatprep.subr.mxu0 0.0
  %376 = vmatpush1.msra.mxu0 0.0
  %377 = vmatprep.subr.mxu0 0.0
  %378 = vmatpush1.msra.mxu0 0.0
  %379 = vmatprep.subr.mxu0 0.0
  %380 = vmatpush1.msra.mxu0 0.0
  %381 = vmatprep.subr.mxu0 0.0
  %382 = vmatpush1.msra.mxu0 0.0
  %383 = vmatprep.subr.mxu0 0.0
  %384 = vmatpush1.msra.mxu0 0.0
  %385 = vmatprep.subr.mxu0 0.0
  %386 = vmatpush1.msra.mxu0 0.0
  %387 = vmatprep.subr.mxu0 0.0
  %388 = vmatpush1.msra.mxu0 0.0
  %389 = vmatprep.subr.mxu0 0.0
  %390 = vmatpush1.msra.mxu0 0.0
  %391 = vmatprep.subr.mxu0 0.0
  %392 = vmatpush1.msra.mxu0 0.0
  %393 = vmatprep.subr.mxu0 0.0
  %394 = vmatpush1.msra.mxu0 %v361
  %395 = vmatprep.subr.mxu0 0.0
  %396 = vmatpush2.msra.mxu0 0.0
  %397 = vmatprep.subr.mxu0 0.0
  %398 = vmatpush2.msra.mxu0 0.0
  %399 = vmatprep.subr.mxu0 0.0
  %400 = vmatpush2.msra.mxu0 0.0
  %401 = vmatprep.subr.mxu0 0.0
  %402 = vmatpush2.msra.mxu0 0.0
  %403 = vmatprep.subr.mxu0 0.0
  %404 = vmatpush2.msra.mxu0 0.0
  %405 = vmatprep.subr.mxu0 0.0
  %406 = vmatpush2.msra.mxu0 0.0
  %407 = vmatprep.subr.mxu0 0.0
  %408 = vmatpush2.msra.mxu0 0.0
  %409 = vmatprep.subr.mxu0 0.0
  %410 = vmatpush2.msra.mxu0 0.0
  %411 = vmatprep.subr.mxu0 0.0
  %412 = vmatpush2.msra.mxu0 0.0
  %413 = vmatprep.subr.mxu0 0.0
  %414 = vmatpush2.msra.mxu0 0.0
  %415 = vmatprep.subr.mxu0 0.0
  %416 = vmatpush2.msra.mxu0 0.0
  %417 = vmatprep.subr.mxu0 0.0
  %418 = vmatpush2.msra.mxu0 0.0
  %419 = vmatprep.subr.mxu0 0.0
  %420 = vmatpush2.msra.mxu0 0.0
  %421 = vmatprep.subr.mxu0 0.0
  %422 = vmatpush2.msra.mxu0 0.0
  %423 = vmatprep.subr.mxu0 0.0
  %424 = vmatpush2.msra.mxu0 0.0
  %425 = vmatprep.subr.mxu0 0.0
  %426 = vmatpush2.msra.mxu0 0.0
  %427 = vmatprep.mubr.f32.mxu0 0.0
  %428 = vmatmul.mubr.f32.gmra.mxu0 %v357
  %v429 = vpop.f32.mrf.mxu0
  %v430 = vadd.f32 0.0, %v429
  %v431 = vpop.f32.mrf.mxu0
  %432 = vdwg.mxu0
  %v433 = vxor.u32 %v430, 2147483648
  %v434 = vmul.f32 %v433, 1.442695
  %v435 = vpow.pop %v434
  %v436 = vadd.f32 %v435, 1.0
  %v437 = vrcp.pop %v436
  %v438 = vmul.f32 1.0, %v437
  %v439 = vlaneseq
  %v440 = vshrl.u32 %v439, 7
  %v441 = vsub.s32 0, %v440
  %v442 = vrot.slane %v438, %v441
  %444 = vbcast.lane.b32.xlu0 %v442, 256
  %v445 = vpop.permute.xlu0 %444
  %s447 = sor.u32 256, 8
  %448 = vbcast.lane.b32.xlu0 %v442, %s447
  %v449 = vpop.permute.xlu0 %448
  %s451 = sor.u32 256, 16
  %452 = vbcast.lane.b32.xlu0 %v442, %s451
  %v453 = vpop.permute.xlu0 %452
  %s455 = sor.u32 256, 24
  %456 = vbcast.lane.b32.xlu0 %v442, %s455
  %v457 = vpop.permute.xlu0 %456
  %v458 = vlaneseq
  %v459 = vshrl.u32 %v458, 7
  %v460 = vsub.s32 1, %v459
  %v461 = vrot.slane %v438, %v460
  %463 = vbcast.lane.b32.xlu0 %v461, 256
  %v464 = vpop.permute.xlu0 %463
  %s466 = sor.u32 256, 8
  %467 = vbcast.lane.b32.xlu0 %v461, %s466
  %v468 = vpop.permute.xlu0 %467
  %s470 = sor.u32 256, 16
  %471 = vbcast.lane.b32.xlu0 %v461, %s470
  %v472 = vpop.permute.xlu0 %471
  %s474 = sor.u32 256, 24
  %475 = vbcast.lane.b32.xlu0 %v461, %s474
  %v476 = vpop.permute.xlu0 %475
  %v477 = vmul.f32 %v27, %v445
  %v478 = vmul.f32 %v28, %v445
  %v479 = vmul.f32 %v29, %v449
  %v480 = vmul.f32 %v30, %v449
  %v481 = vmul.f32 %v31, %v453
  %v482 = vmul.f32 %v32, %v453
  %v483 = vmul.f32 %v33, %v457
  %v484 = vmul.f32 %v34, %v457
  %v485 = vmul.f32 %v35, %v464
  %v486 = vmul.f32 %v36, %v464
  %v487 = vmul.f32 %v37, %v468
  %v488 = vmul.f32 %v38, %v468
  %v489 = vmul.f32 %v39, %v472
  %v490 = vmul.f32 %v40, %v472
  %v491 = vmul.f32 %v41, %v476
  %v492 = vmul.f32 %v42, %v476
  %v493 = vmax.f32 %v477, %v479
  %v494 = vmax.f32 %v493, %v481
  %v495 = vmax.f32 %v494, %v483
  %v496 = vrot.slane %v495, 4
  %v497 = vmax.f32 %v495, %v496
  %v498 = vrot.slane %v497, 2
  %v499 = vmax.f32 %v497, %v498
  %v500 = vrot.slane %v499, 1
  %v501 = vmax.f32 %v499, %v500
  %v502 = vmax.f32 %v478, %v480
  %v503 = vmax.f32 %v502, %v482
  %v504 = vmax.f32 %v503, %v484
  %v505 = vrot.slane %v504, 4
  %v506 = vmax.f32 %v504, %v505
  %v507 = vrot.slane %v506, 2
  %v508 = vmax.f32 %v506, %v507
  %v509 = vrot.slane %v508, 1
  %v510 = vmax.f32 %v508, %v509
  %v511 = vmax.f32 %v485, %v487
  %v512 = vmax.f32 %v511, %v489
  %v513 = vmax.f32 %v512, %v491
  %v514 = vrot.slane %v513, 4
  %v515 = vmax.f32 %v513, %v514
  %v516 = vrot.slane %v515, 2
  %v517 = vmax.f32 %v515, %v516
  %v518 = vrot.slane %v517, 1
  %v519 = vmax.f32 %v517, %v518
  %v520 = vmax.f32 %v486, %v488
  %v521 = vmax.f32 %v520, %v490
  %v522 = vmax.f32 %v521, %v492
  %v523 = vrot.slane %v522, 4
  %v524 = vmax.f32 %v522, %v523
  %v525 = vrot.slane %v524, 2
  %v526 = vmax.f32 %v524, %v525
  %v527 = vrot.slane %v526, 1
  %v528 = vmax.f32 %v526, %v527
  %v529 = vadd.f32 %v477, %v479
  %v530 = vadd.f32 %v529, %v481
  %v531 = vadd.f32 %v530, %v483
  %v532 = vrot.slane %v531, 4
  %v533 = vadd.f32 %v531, %v532
  %v534 = vrot.slane %v533, 2
  %v535 = vadd.f32 %v533, %v534
  %v536 = vrot.slane %v535, 1
  %v537 = vadd.f32 %v535, %v536
  %v538 = vadd.f32 %v478, %v480
  %v539 = vadd.f32 %v538, %v482
  %v540 = vadd.f32 %v539, %v484
  %v541 = vrot.slane %v540, 4
  %v542 = vadd.f32 %v540, %v541
  %v543 = vrot.slane %v542, 2
  %v544 = vadd.f32 %v542, %v543
  %v545 = vrot.slane %v544, 1
  %v546 = vadd.f32 %v544, %v545
  %v547 = vadd.f32 %v485, %v487
  %v548 = vadd.f32 %v547, %v489
  %v549 = vadd.f32 %v548, %v491
  %v550 = vrot.slane %v549, 4
  %v551 = vadd.f32 %v549, %v550
  %v552 = vrot.slane %v551, 2
  %v553 = vadd.f32 %v551, %v552
  %v554 = vrot.slane %v553, 1
  %v555 = vadd.f32 %v553, %v554
  %v556 = vadd.f32 %v486, %v488
  %v557 = vadd.f32 %v556, %v490
  %v558 = vadd.f32 %v557, %v492
  %v559 = vrot.slane %v558, 4
  %v560 = vadd.f32 %v558, %v559
  %v561 = vrot.slane %v560, 2
  %v562 = vadd.f32 %v560, %v561
  %v563 = vrot.slane %v562, 1
  %v564 = vadd.f32 %v562, %v563
  %v565 = vmul.f32 %v537, 0.03125
  %v566 = vmul.f32 %v546, 0.03125
  %v567 = vmul.f32 %v555, 0.03125
  %v568 = vmul.f32 %v564, 0.03125
  %v573 = vsel %vm157, %v519, %v501
  %v574 = vsel %vm157, %v528, %v510
  %v581 = vsel %vm157, %v567, %v565
  %v582 = vsel %vm157, %v568, %v566
  %v585 = vld [vmem:[%s4] sm:$0xff]
  %v586 = vld [vmem:[%s4 + $0x8] sm:$0xff]
  %v587 = vld [vmem:[%s4 + $0x10] sm:$0xff]
  %v588 = vld [vmem:[%s4 + $0x18] sm:$0xff]
  %v589 = vld [vmem:[%s4 + $0x20] sm:$0xff]
  %v590 = vld [vmem:[%s4 + $0x28] sm:$0xff]
  %v591 = vld [vmem:[%s4 + $0x30] sm:$0xff]
  %v592 = vld [vmem:[%s4 + $0x38] sm:$0xff]
  %v593 = vld [vmem:[%s4 + $0x40] sm:$0xff]
  %v594 = vld [vmem:[%s4 + $0x48] sm:$0xff]
  %v595 = vld [vmem:[%s4 + $0x50] sm:$0xff]
  %v596 = vld [vmem:[%s4 + $0x58] sm:$0xff]
  %v597 = vld [vmem:[%s4 + $0x60] sm:$0xff]
  %v598 = vld [vmem:[%s4 + $0x68] sm:$0xff]
  %v599 = vld [vmem:[%s4 + $0x70] sm:$0xff]
  %v600 = vld [vmem:[%s4 + $0x78] sm:$0xff]
  %v601 = vld [vmem:[%s4 + $0x80] sm:$0xff]
  %v602 = vld [vmem:[%s4 + $0x88] sm:$0xff]
  %v603 = vld [vmem:[%s4 + $0x90] sm:$0xff]
  %v604 = vld [vmem:[%s4 + $0x98] sm:$0xff]
  %v605 = vld [vmem:[%s4 + $0xa0] sm:$0xff]
  %v606 = vld [vmem:[%s4 + $0xa8] sm:$0xff]
  %v607 = vld [vmem:[%s4 + $0xb0] sm:$0xff]
  %v608 = vld [vmem:[%s4 + $0xb8] sm:$0xff]
  %v609 = vld [vmem:[%s4 + $0xc0] sm:$0xff]
  %v610 = vld [vmem:[%s4 + $0xc8] sm:$0xff]
  %v611 = vld [vmem:[%s4 + $0xd0] sm:$0xff]
  %v612 = vld [vmem:[%s4 + $0xd8] sm:$0xff]
  %v613 = vld [vmem:[%s4 + $0xe0] sm:$0xff]
  %v614 = vld [vmem:[%s4 + $0xe8] sm:$0xff]
  %v615 = vld [vmem:[%s4 + $0xf0] sm:$0xff]
  %v616 = vld [vmem:[%s4 + $0xf8] sm:$0xff]
  %v617 = vld [vmem:[%s4 + $0x100] sm:$0xff]
  %v618 = vld [vmem:[%s4 + $0x108] sm:$0xff]
  %v619 = vld [vmem:[%s4 + $0x110] sm:$0xff]
  %v620 = vld [vmem:[%s4 + $0x118] sm:$0xff]
  %v621 = vld [vmem:[%s4 + $0x120] sm:$0xff]
  %v622 = vld [vmem:[%s4 + $0x128] sm:$0xff]
  %v623 = vld [vmem:[%s4 + $0x130] sm:$0xff]
  %v624 = vld [vmem:[%s4 + $0x138] sm:$0xff]
  %v625 = vld [vmem:[%s4 + $0x140] sm:$0xff]
  %v626 = vld [vmem:[%s4 + $0x148] sm:$0xff]
  %v627 = vld [vmem:[%s4 + $0x150] sm:$0xff]
  %v628 = vld [vmem:[%s4 + $0x158] sm:$0xff]
  %v629 = vld [vmem:[%s4 + $0x160] sm:$0xff]
  %v630 = vld [vmem:[%s4 + $0x168] sm:$0xff]
  %v631 = vld [vmem:[%s4 + $0x170] sm:$0xff]
  %v632 = vld [vmem:[%s4 + $0x178] sm:$0xff]
  %v633 = vld [vmem:[%s4 + $0x180] sm:$0xff]
  %v634 = vld [vmem:[%s4 + $0x188] sm:$0xff]
  %v635 = vld [vmem:[%s4 + $0x190] sm:$0xff]
  %v636 = vld [vmem:[%s4 + $0x198] sm:$0xff]
  %v637 = vld [vmem:[%s4 + $0x1a0] sm:$0xff]
  %v638 = vld [vmem:[%s4 + $0x1a8] sm:$0xff]
  %v639 = vld [vmem:[%s4 + $0x1b0] sm:$0xff]
  %v640 = vld [vmem:[%s4 + $0x1b8] sm:$0xff]
  %v641 = vld [vmem:[%s4 + $0x1c0] sm:$0xff]
  %v642 = vld [vmem:[%s4 + $0x1c8] sm:$0xff]
  %v643 = vld [vmem:[%s4 + $0x1d0] sm:$0xff]
  %v644 = vld [vmem:[%s4 + $0x1d8] sm:$0xff]
  %v645 = vld [vmem:[%s4 + $0x1e0] sm:$0xff]
  %v646 = vld [vmem:[%s4 + $0x1e8] sm:$0xff]
  %v647 = vld [vmem:[%s4 + $0x1f0] sm:$0xff]
  %v648 = vld [vmem:[%s4 + $0x1f8] sm:$0xff]
  %v649 = vld [vmem:[%s4 + $0x200] sm:$0xff]
  %v650 = vld [vmem:[%s4 + $0x208] sm:$0xff]
  %v651 = vld [vmem:[%s4 + $0x210] sm:$0xff]
  %v652 = vld [vmem:[%s4 + $0x218] sm:$0xff]
  %v653 = vld [vmem:[%s4 + $0x220] sm:$0xff]
  %v654 = vld [vmem:[%s4 + $0x228] sm:$0xff]
  %v655 = vld [vmem:[%s4 + $0x230] sm:$0xff]
  %v656 = vld [vmem:[%s4 + $0x238] sm:$0xff]
  %v657 = vld [vmem:[%s4 + $0x240] sm:$0xff]
  %v658 = vld [vmem:[%s4 + $0x248] sm:$0xff]
  %v659 = vld [vmem:[%s4 + $0x250] sm:$0xff]
  %v660 = vld [vmem:[%s4 + $0x258] sm:$0xff]
  %v661 = vld [vmem:[%s4 + $0x260] sm:$0xff]
  %v662 = vld [vmem:[%s4 + $0x268] sm:$0xff]
  %v663 = vld [vmem:[%s4 + $0x270] sm:$0xff]
  %v664 = vld [vmem:[%s4 + $0x278] sm:$0xff]
  %v665 = vld [vmem:[%s4 + $0x280] sm:$0xff]
  %v666 = vld [vmem:[%s4 + $0x288] sm:$0xff]
  %v667 = vld [vmem:[%s4 + $0x290] sm:$0xff]
  %v668 = vld [vmem:[%s4 + $0x298] sm:$0xff]
  %v669 = vld [vmem:[%s4 + $0x2a0] sm:$0xff]
  %v670 = vld [vmem:[%s4 + $0x2a8] sm:$0xff]
  %v671 = vld [vmem:[%s4 + $0x2b0] sm:$0xff]
  %v672 = vld [vmem:[%s4 + $0x2b8] sm:$0xff]
  %v673 = vld [vmem:[%s4 + $0x2c0] sm:$0xff]
  %v674 = vld [vmem:[%s4 + $0x2c8] sm:$0xff]
  %v675 = vld [vmem:[%s4 + $0x2d0] sm:$0xff]
  %v676 = vld [vmem:[%s4 + $0x2d8] sm:$0xff]
  %v677 = vld [vmem:[%s4 + $0x2e0] sm:$0xff]
  %v678 = vld [vmem:[%s4 + $0x2e8] sm:$0xff]
  %v679 = vld [vmem:[%s4 + $0x2f0] sm:$0xff]
  %v680 = vld [vmem:[%s4 + $0x2f8] sm:$0xff]
  %v681 = vld [vmem:[%s4 + $0x300] sm:$0xff]
  %v682 = vld [vmem:[%s4 + $0x308] sm:$0xff]
  %v683 = vld [vmem:[%s4 + $0x310] sm:$0xff]
  %v684 = vld [vmem:[%s4 + $0x318] sm:$0xff]
  %v685 = vld [vmem:[%s4 + $0x320] sm:$0xff]
  %v686 = vld [vmem:[%s4 + $0x328] sm:$0xff]
  %v687 = vld [vmem:[%s4 + $0x330] sm:$0xff]
  %v688 = vld [vmem:[%s4 + $0x338] sm:$0xff]
  %v689 = vld [vmem:[%s4 + $0x340] sm:$0xff]
  %v690 = vld [vmem:[%s4 + $0x348] sm:$0xff]
  %v691 = vld [vmem:[%s4 + $0x350] sm:$0xff]
  %v692 = vld [vmem:[%s4 + $0x358] sm:$0xff]
  %v693 = vld [vmem:[%s4 + $0x360] sm:$0xff]
  %v694 = vld [vmem:[%s4 + $0x368] sm:$0xff]
  %v695 = vld [vmem:[%s4 + $0x370] sm:$0xff]
  %v696 = vld [vmem:[%s4 + $0x378] sm:$0xff]
  %v697 = vld [vmem:[%s4 + $0x380] sm:$0xff]
  %v698 = vld [vmem:[%s4 + $0x388] sm:$0xff]
  %v699 = vld [vmem:[%s4 + $0x390] sm:$0xff]
  %v700 = vld [vmem:[%s4 + $0x398] sm:$0xff]
  %v701 = vld [vmem:[%s4 + $0x3a0] sm:$0xff]
  %v702 = vld [vmem:[%s4 + $0x3a8] sm:$0xff]
  %v703 = vld [vmem:[%s4 + $0x3b0] sm:$0xff]
  %v704 = vld [vmem:[%s4 + $0x3b8] sm:$0xff]
  %v705 = vld [vmem:[%s4 + $0x3c0] sm:$0xff]
  %v706 = vld [vmem:[%s4 + $0x3c8] sm:$0xff]
  %v707 = vld [vmem:[%s4 + $0x3d0] sm:$0xff]
  %v708 = vld [vmem:[%s4 + $0x3d8] sm:$0xff]
  %v709 = vld [vmem:[%s4 + $0x3e0] sm:$0xff]
  %v710 = vld [vmem:[%s4 + $0x3e8] sm:$0xff]
  %v711 = vld [vmem:[%s4 + $0x3f0] sm:$0xff]
  %v712 = vld [vmem:[%s4 + $0x3f8] sm:$0xff]
  %s713 = sld [smem:[#allocation2]]
  %v714 = vstv %s713
  %715 = vmatprep.subr.mxu0 %v616
  %716 = vmatpush1.msra.mxu0 %v615
  %717 = vmatprep.subr.mxu0 %v614
  %718 = vmatpush1.msra.mxu0 %v613
  %719 = vmatprep.subr.mxu0 %v612
  %720 = vmatpush1.msra.mxu0 %v611
  %721 = vmatprep.subr.mxu0 %v610
  %722 = vmatpush1.msra.mxu0 %v609
  %723 = vmatprep.subr.mxu0 %v608
  %724 = vmatpush1.msra.mxu0 %v607
  %725 = vmatprep.subr.mxu0 %v606
  %726 = vmatpush1.msra.mxu0 %v605
  %727 = vmatprep.subr.mxu0 %v604
  %728 = vmatpush1.msra.mxu0 %v603
  %729 = vmatprep.subr.mxu0 %v602
  %730 = vmatpush1.msra.mxu0 %v601
  %731 = vmatprep.subr.mxu0 %v600
  %732 = vmatpush1.msra.mxu0 %v599
  %733 = vmatprep.subr.mxu0 %v598
  %734 = vmatpush1.msra.mxu0 %v597
  %735 = vmatprep.subr.mxu0 %v596
  %736 = vmatpush1.msra.mxu0 %v595
  %737 = vmatprep.subr.mxu0 %v594
  %738 = vmatpush1.msra.mxu0 %v593
  %739 = vmatprep.subr.mxu0 %v592
  %740 = vmatpush1.msra.mxu0 %v591
  %741 = vmatprep.subr.mxu0 %v590
  %742 = vmatpush1.msra.mxu0 %v589
  %743 = vmatprep.subr.mxu0 %v588
  %744 = vmatpush1.msra.mxu0 %v587
  %745 = vmatprep.subr.mxu0 %v586
  %746 = vmatpush1.msra.mxu0 %v585
  %747 = vmatprep.subr.mxu0 %v648
  %748 = vmatpush2.msra.mxu0 %v647
  %749 = vmatprep.subr.mxu0 %v646
  %750 = vmatpush2.msra.mxu0 %v645
  %751 = vmatprep.subr.mxu0 %v644
  %752 = vmatpush2.msra.mxu0 %v643
  %753 = vmatprep.subr.mxu0 %v642
  %754 = vmatpush2.msra.mxu0 %v641
  %755 = vmatprep.subr.mxu0 %v640
  %756 = vmatpush2.msra.mxu0 %v639
  %757 = vmatprep.subr.mxu0 %v638
  %758 = vmatpush2.msra.mxu0 %v637
  %759 = vmatprep.subr.mxu0 %v636
  %760 = vmatpush2.msra.mxu0 %v635
  %761 = vmatprep.subr.mxu0 %v634
  %762 = vmatpush2.msra.mxu0 %v633
  %763 = vmatprep.subr.mxu0 %v632
  %764 = vmatpush2.msra.mxu0 %v631
  %765 = vmatprep.subr.mxu0 %v630
  %766 = vmatpush2.msra.mxu0 %v629
  %767 = vmatprep.subr.mxu0 %v628
  %768 = vmatpush2.msra.mxu0 %v627
  %769 = vmatprep.subr.mxu0 %v626
  %770 = vmatpush2.msra.mxu0 %v625
  %771 = vmatprep.subr.mxu0 %v624
  %772 = vmatpush2.msra.mxu0 %v623
  %773 = vmatprep.subr.mxu0 %v622
  %774 = vmatpush2.msra.mxu0 %v621
  %775 = vmatprep.subr.mxu0 %v620
  %776 = vmatpush2.msra.mxu0 %v619
  %777 = vmatprep.subr.mxu0 %v618
  %778 = vmatpush2.msra.mxu0 %v617
  %779 = vmatprep.mubr.f32.mxu0 %v574
  %780 = vmatmul.mubr.f32.gmra.mxu0 %v573
  %v781 = vpop.f32.mrf.mxu0
  %v782 = vadd.f32 %v714, %v781
  %v783 = vpop.f32.mrf.mxu0
  %v784 = vadd.f32 %v714, %v783
  %785 = vdwg.mxu0
  %786 = vmatprep.subr.mxu0 %v680
  %787 = vmatpush1.msra.mxu0 %v679
  %788 = vmatprep.subr.mxu0 %v678
  %789 = vmatpush1.msra.mxu0 %v677
  %790 = vmatprep.subr.mxu0 %v676
  %791 = vmatpush1.msra.mxu0 %v675
  %792 = vmatprep.subr.mxu0 %v674
  %793 = vmatpush1.msra.mxu0 %v673
  %794 = vmatprep.subr.mxu0 %v672
  %795 = vmatpush1.msra.mxu0 %v671
  %796 = vmatprep.subr.mxu0 %v670
  %797 = vmatpush1.msra.mxu0 %v669
  %798 = vmatprep.subr.mxu0 %v668
  %799 = vmatpush1.msra.mxu0 %v667
  %800 = vmatprep.subr.mxu0 %v666
  %801 = vmatpush1.msra.mxu0 %v665
  %802 = vmatprep.subr.mxu0 %v664
  %803 = vmatpush1.msra.mxu0 %v663
  %804 = vmatprep.subr.mxu0 %v662
  %805 = vmatpush1.msra.mxu0 %v661
  %806 = vmatprep.subr.mxu0 %v660
  %807 = vmatpush1.msra.mxu0 %v659
  %808 = vmatprep.subr.mxu0 %v658
  %809 = vmatpush1.msra.mxu0 %v657
  %810 = vmatprep.subr.mxu0 %v656
  %811 = vmatpush1.msra.mxu0 %v655
  %812 = vmatprep.subr.mxu0 %v654
  %813 = vmatpush1.msra.mxu0 %v653
  %814 = vmatprep.subr.mxu0 %v652
  %815 = vmatpush1.msra.mxu0 %v651
  %816 = vmatprep.subr.mxu0 %v650
  %817 = vmatpush1.msra.mxu0 %v649
  %818 = vmatprep.subr.mxu0 %v712
  %819 = vmatpush2.msra.mxu0 %v711
  %820 = vmatprep.subr.mxu0 %v710
  %821 = vmatpush2.msra.mxu0 %v709
  %822 = vmatprep.subr.mxu0 %v708
  %823 = vmatpush2.msra.mxu0 %v707
  %824 = vmatprep.subr.mxu0 %v706
  %825 = vmatpush2.msra.mxu0 %v705
  %826 = vmatprep.subr.mxu0 %v704
  %827 = vmatpush2.msra.mxu0 %v703
  %828 = vmatprep.subr.mxu0 %v702
  %829 = vmatpush2.msra.mxu0 %v701
  %830 = vmatprep.subr.mxu0 %v700
  %831 = vmatpush2.msra.mxu0 %v699
  %832 = vmatprep.subr.mxu0 %v698
  %833 = vmatpush2.msra.mxu0 %v697
  %834 = vmatprep.subr.mxu0 %v696
  %835 = vmatpush2.msra.mxu0 %v695
  %836 = vmatprep.subr.mxu0 %v694
  %837 = vmatpush2.msra.mxu0 %v693
  %838 = vmatprep.subr.mxu0 %v692
  %839 = vmatpush2.msra.mxu0 %v691
  %840 = vmatprep.subr.mxu0 %v690
  %841 = vmatpush2.msra.mxu0 %v689
  %842 = vmatprep.subr.mxu0 %v688
  %843 = vmatpush2.msra.mxu0 %v687
  %844 = vmatprep.subr.mxu0 %v686
  %845 = vmatpush2.msra.mxu0 %v685
  %846 = vmatprep.subr.mxu0 %v684
  %847 = vmatpush2.msra.mxu0 %v683
  %848 = vmatprep.subr.mxu0 %v682
  %849 = vmatpush2.msra.mxu0 %v681
  %850 = vmatprep.mubr.f32.mxu0 %v582
  %851 = vmatmul.mubr.f32.gmra.mxu0 %v581
  %v852 = vpop.f32.mrf.mxu0
  %v853 = vadd.f32 %v782, %v852
  %v854 = vpop.f32.mrf.mxu0
  %v855 = vadd.f32 %v784, %v854
  %856 = vdwg.mxu0
  %v857 = vxor.u32 %v853, 2147483648
  %v858 = vxor.u32 %v855, 2147483648
  %v859 = vmul.f32 %v857, 1.442695
  %v860 = vpow.pop %v859
  %v861 = vmul.f32 %v858, 1.442695
  %v862 = vpow.pop %v861
  %v863 = vadd.f32 %v860, 1.0
  %v864 = vadd.f32 %v862, 1.0
  %v865 = vrcp.pop %v863
  %v866 = vmul.f32 1.0, %v865
  %v867 = vrcp.pop %v864
  %v868 = vmul.f32 1.0, %v867
  %v871 = vcombine.low %v866, %v868
  %v873 = vunpack.c.l.s4 1966171168
  %v874 = vunpack.c.0.s8 %v873
  %v875 = vlaneseq
  %v876 = vshrl.u32 %v875, 7
  %v877 = vsub.s32 %v874, %v876
  %v878 = vrot.slane %v871, %v877
  %v879 = vcombine.high %v878, %v878
  %v881 = vunpack.c.l.s4 1966171168
  %v882 = vunpack.c.0.s8 %v881
  %v883 = vlaneseq
  %v884 = vshrl.u32 %v883, 7
  %v885 = vsub.s32 %v882, %v884
  %v886 = vrot.slane %v878, %v885
  %v888 = vunpack.c.l.s4 1966171168
  %v889 = vunpack.c.0.s8 %v888
  %v890 = vlaneseq
  %v891 = vshrl.u32 %v890, 7
  %v892 = vsub.s32 %v889, %v891
  %v893 = vrot.slane %v879, %v892
  %v894 = vlaneseq
  %v895 = vshrl.u32 %v894, 7
  %v896 = vsub.s32 0, %v895
  %v897 = vrot.slane %v886, %v896
  %v898 = vlaneseq
  %v899 = vshrl.u32 %v898, 7
  %v900 = vsub.s32 1, %v899
  %v901 = vrot.slane %v886, %v900
  %v902 = vlaneseq
  %v903 = vshrl.u32 %v902, 7
  %v904 = vsub.s32 0, %v903
  %v905 = vrot.slane %v893, %v904
  %v906 = vlaneseq
  %v907 = vshrl.u32 %v906, 7
  %v908 = vsub.s32 1, %v907
  %v909 = vrot.slane %v893, %v908
  %v914 = vmul.f32 %v477, %v897
  %v915 = vmul.f32 %v478, %v901
  %v916 = vmul.f32 %v479, %v897
  %v917 = vmul.f32 %v480, %v901
  %v918 = vmul.f32 %v481, %v897
  %v919 = vmul.f32 %v482, %v901
  %v920 = vmul.f32 %v483, %v897
  %v921 = vmul.f32 %v484, %v901
  %v922 = vmul.f32 %v485, %v905
  %v923 = vmul.f32 %v486, %v909
  %v924 = vmul.f32 %v487, %v905
  %v925 = vmul.f32 %v488, %v909
  %v926 = vmul.f32 %v489, %v905
  %v927 = vmul.f32 %v490, %v909
  %v928 = vmul.f32 %v491, %v905
  %v929 = vmul.f32 %v492, %v909
  %v930 = vadd.f32 %v27, %v914
  %v931 = vadd.f32 %v28, %v915
  %v932 = vadd.f32 %v29, %v916
  %v933 = vadd.f32 %v30, %v917
  %v934 = vadd.f32 %v31, %v918
  %v935 = vadd.f32 %v32, %v919
  %v936 = vadd.f32 %v33, %v920
  %v937 = vadd.f32 %v34, %v921
  %v938 = vadd.f32 %v35, %v922
  %v939 = vadd.f32 %v36, %v923
  %v940 = vadd.f32 %v37, %v924
  %v941 = vadd.f32 %v38, %v925
  %v942 = vadd.f32 %v39, %v926
  %v943 = vadd.f32 %v40, %v927
  %v944 = vadd.f32 %v41, %v928
  %v945 = vadd.f32 %v42, %v929
  %v946 = vadd.f32 %v930, %v938
  %v947 = vadd.f32 %v931, %v939
  %v948 = vadd.f32 %v932, %v940
  %v949 = vadd.f32 %v933, %v941
  %v950 = vadd.f32 %v934, %v942
  %v951 = vadd.f32 %v935, %v943
  %v952 = vadd.f32 %v936, %v944
  %v953 = vadd.f32 %v937, %v945
  %v954 = vadd.f32 %v946, %v947
  %955 = vadd.xlane.f32.xlu0 %v954
  %v956 = vpop.xlane.xlu0 %955
  %v957 = vadd.f32 %v948, %v949
  %958 = vadd.xlane.f32.xlu0 %v957
  %v959 = vpop.xlane.xlu0 %958
  %v960 = vadd.f32 %v950, %v951
  %961 = vadd.xlane.f32.xlu0 %v960
  %v962 = vpop.xlane.xlu0 %961
  %v963 = vadd.f32 %v952, %v953
  %964 = vadd.xlane.f32.xlu0 %v963
  %v965 = vpop.xlane.xlu0 %964
  %v966 = vmul.f32 %v956, 0.001953125
  %v967 = vmul.f32 %v959, 0.001953125
  %v968 = vmul.f32 %v962, 0.001953125
  %v969 = vmul.f32 %v965, 0.001953125
  %v970 = vsub.f32 %v930, %v966
  %v971 = vsub.f32 %v931, %v966
  %v972 = vsub.f32 %v932, %v967
  %v973 = vsub.f32 %v933, %v967
  %v974 = vsub.f32 %v934, %v968
  %v975 = vsub.f32 %v935, %v968
  %v976 = vsub.f32 %v936, %v969
  %v977 = vsub.f32 %v937, %v969
  %v978 = vsub.f32 %v938, %v966
  %v979 = vsub.f32 %v939, %v966
  %v980 = vsub.f32 %v940, %v967
  %v981 = vsub.f32 %v941, %v967
  %v982 = vsub.f32 %v942, %v968
  %v983 = vsub.f32 %v943, %v968
  %v984 = vsub.f32 %v944, %v969
  %v985 = vsub.f32 %v945, %v969
  %v986 = vmul.f32 %v970, %v970
  %v987 = vmul.f32 %v971, %v971
  %v988 = vmul.f32 %v972, %v972
  %v989 = vmul.f32 %v973, %v973
  %v990 = vmul.f32 %v974, %v974
  %v991 = vmul.f32 %v975, %v975
  %v992 = vmul.f32 %v976, %v976
  %v993 = vmul.f32 %v977, %v977
  %v994 = vmul.f32 %v978, %v978
  %v995 = vmul.f32 %v979, %v979
  %v996 = vmul.f32 %v980, %v980
  %v997 = vmul.f32 %v981, %v981
  %v998 = vmul.f32 %v982, %v982
  %v999 = vmul.f32 %v983, %v983
  %v1000 = vmul.f32 %v984, %v984
  %v1001 = vmul.f32 %v985, %v985
  %v1002 = vadd.f32 %v986, %v994
  %v1003 = vadd.f32 %v987, %v995
  %v1004 = vadd.f32 %v988, %v996
  %v1005 = vadd.f32 %v989, %v997
  %v1006 = vadd.f32 %v990, %v998
  %v1007 = vadd.f32 %v991, %v999
  %v1008 = vadd.f32 %v992, %v1000
  %v1009 = vadd.f32 %v993, %v1001
  %v1010 = vadd.f32 %v1002, %v1003
  %1011 = vadd.xlane.f32.xlu0 %v1010
  %v1012 = vpop.xlane.xlu0 %1011
  %v1013 = vadd.f32 %v1004, %v1005
  %1014 = vadd.xlane.f32.xlu0 %v1013
  %v1015 = vpop.xlane.xlu0 %1014
  %v1016 = vadd.f32 %v1006, %v1007
  %1017 = vadd.xlane.f32.xlu0 %v1016
  %v1018 = vpop.xlane.xlu0 %1017
  %v1019 = vadd.f32 %v1008, %v1009
  %1020 = vadd.xlane.f32.xlu0 %v1019
  %v1021 = vpop.xlane.xlu0 %1020
  %v1022 = vmul.f32 %v1012, 0.001953125
  %v1023 = vmul.f32 %v1015, 0.001953125
  %v1024 = vmul.f32 %v1018, 0.001953125
  %v1025 = vmul.f32 %v1021, 0.001953125
  %v1026 = vld [vmem:[%s5] sm:$0xff]
  %v1027 = vld [vmem:[%s5 + $0x8] sm:$0xff]
  %v1028 = vld [vmem:[%s5 + $0x10] sm:$0xff]
  %v1029 = vld [vmem:[%s5 + $0x18] sm:$0xff]
  %v1030 = vadd.f32 %v1022, 1e-05
  %v1031 = vadd.f32 %v1023, 1e-05
  %v1032 = vadd.f32 %v1024, 1e-05
  %v1033 = vadd.f32 %v1025, 1e-05
  %v1034 = vrsqrt.pop %v1030
  %v1035 = vrsqrt.pop %v1031
  %v1036 = vrsqrt.pop %v1032
  %v1037 = vrsqrt.pop %v1033
  %v1038 = vmul.f32 %v1026, %v1034
  %v1039 = vmul.f32 %v1027, %v1035
  %v1040 = vmul.f32 %v1028, %v1036
  %v1041 = vmul.f32 %v1029, %v1037
  %v1042 = vld [vmem:[%s6] sm:$0xff]
  %v1043 = vld [vmem:[%s6 + $0x8] sm:$0xff]
  %v1044 = vld [vmem:[%s6 + $0x10] sm:$0xff]
  %v1045 = vld [vmem:[%s6 + $0x18] sm:$0xff]
  %v1046 = vmul.f32 %v966, %v1038
  %v1047 = vmul.f32 %v967, %v1039
  %v1048 = vmul.f32 %v968, %v1040
  %v1049 = vmul.f32 %v969, %v1041
  %v1050 = vsub.f32 %v1042, %v1046
  %v1051 = vsub.f32 %v1043, %v1047
  %v1052 = vsub.f32 %v1044, %v1048
  %v1053 = vsub.f32 %v1045, %v1049
  %1055 = vset.pattern.permute.xlu0 0
  %1056 = vperm.xlu0 %1055, %v1038
  %v1057 = vpop.permute.xlu0 %1056
  %1060 = vset.pattern.permute.xlu0 0
  %1061 = vperm.xlu0 %1060, %v1039
  %v1062 = vpop.permute.xlu0 %1061
  %1065 = vset.pattern.permute.xlu0 0
  %1066 = vperm.xlu0 %1065, %v1040
  %v1067 = vpop.permute.xlu0 %1066
  %1070 = vset.pattern.permute.xlu0 0
  %1071 = vperm.xlu0 %1070, %v1041
  %v1072 = vpop.permute.xlu0 %1071
  %v1074 = vmul.f32 %v930, %v1057
  %v1075 = vmul.f32 %v931, %v1057
  %v1076 = vmul.f32 %v932, %v1062
  %v1077 = vmul.f32 %v933, %v1062
  %v1078 = vmul.f32 %v934, %v1067
  %v1079 = vmul.f32 %v935, %v1067
  %v1080 = vmul.f32 %v936, %v1072
  %v1081 = vmul.f32 %v937, %v1072
  %v1082 = vmul.f32 %v938, %v1057
  %v1083 = vmul.f32 %v939, %v1057
  %v1084 = vmul.f32 %v940, %v1062
  %v1085 = vmul.f32 %v941, %v1062
  %v1086 = vmul.f32 %v942, %v1067
  %v1087 = vmul.f32 %v943, %v1067
  %v1088 = vmul.f32 %v944, %v1072
  %v1089 = vmul.f32 %v945, %v1072
  %1091 = vset.pattern.permute.xlu0 0
  %1092 = vperm.xlu0 %1091, %v1050
  %v1093 = vpop.permute.xlu0 %1092
  %1096 = vset.pattern.permute.xlu0 0
  %1097 = vperm.xlu0 %1096, %v1051
  %v1098 = vpop.permute.xlu0 %1097
  %1101 = vset.pattern.permute.xlu0 0
  %1102 = vperm.xlu0 %1101, %v1052
  %v1103 = vpop.permute.xlu0 %1102
  %1106 = vset.pattern.permute.xlu0 0
  %1107 = vperm.xlu0 %1106, %v1053
  %v1108 = vpop.permute.xlu0 %1107
  %v1110 = vadd.f32 %v1074, %v1093
  %v1111 = vadd.f32 %v1075, %v1093
  %v1112 = vadd.f32 %v1076, %v1098
  %v1113 = vadd.f32 %v1077, %v1098
  %v1114 = vadd.f32 %v1078, %v1103
  %v1115 = vadd.f32 %v1079, %v1103
  %v1116 = vadd.f32 %v1080, %v1108
  %v1117 = vadd.f32 %v1081, %v1108
  %v1118 = vadd.f32 %v1082, %v1093
  %v1119 = vadd.f32 %v1083, %v1093
  %v1120 = vadd.f32 %v1084, %v1098
  %v1121 = vadd.f32 %v1085, %v1098
  %v1122 = vadd.f32 %v1086, %v1103
  %v1123 = vadd.f32 %v1087, %v1103
  %v1124 = vadd.f32 %v1088, %v1108
  %v1125 = vadd.f32 %v1089, %v1108
  %1126 = vst [vmem:[%s7] sm:$0xff] %v1110
  %1127 = vst [vmem:[%s7 + $0x8] sm:$0xff] %v1111
  %1128 = vst [vmem:[%s7 + $0x10] sm:$0xff] %v1112
  %1129 = vst [vmem:[%s7 + $0x18] sm:$0xff] %v1113
  %1130 = vst [vmem:[%s7 + $0x20] sm:$0xff] %v1114
  %1131 = vst [vmem:[%s7 + $0x28] sm:$0xff] %v1115
  %1132 = vst [vmem:[%s7 + $0x30] sm:$0xff] %v1116
  %1133 = vst [vmem:[%s7 + $0x38] sm:$0xff] %v1117
  %1134 = vst [vmem:[%s7 + $0x40] sm:$0xff] %v1118
  %1135 = vst [vmem:[%s7 + $0x48] sm:$0xff] %v1119
  %1136 = vst [vmem:[%s7 + $0x50] sm:$0xff] %v1120
  %1137 = vst [vmem:[%s7 + $0x58] sm:$0xff] %v1121
  %1138 = vst [vmem:[%s7 + $0x60] sm:$0xff] %v1122
  %1139 = vst [vmem:[%s7 + $0x68] sm:$0xff] %v1123
  %1140 = vst [vmem:[%s7 + $0x70] sm:$0xff] %v1124
  %1141 = vst [vmem:[%s7 + $0x78] sm:$0xff] %v1125
  // Predicated region
  $region30: #{cbam_forward.1} parent=0 // pred_check
    _
  $region31: #{cbam_forward.1} parent=0 // pred_check_branch
    %1143 = sbr.rel (0) target = $region33
  $region32: #{cbam_forward.1} parent=0 // pred_region
    _
  $region33: #{cbam_forward.1} parent=0 // pred_fallthru
    _
  // Predicated region
  $region34: #{cbam_forward.1} parent=0 // pred_check
    _
  $region35: #{cbam_forward.1} parent=0 // pred_check_branch
    %1145 = sbr.rel (0) target = $region37
  $region36: #{cbam_forward.1} parent=0 // pred_region
    _
  $region37: #{cbam_forward.1} parent=0 // pred_fallthru
    _

</llo_original>
